<compile_context>
chip_gen: v6e
topology: v6e:2x2x1
jax: 0.10.0
libtpu: 0.0.40
codegen_flags: <defaults>
</compile_context>

<pallas_src>
import jax
import jax.numpy as jnp
from jax.experimental import pallas as pl
from jax.experimental.pallas import tpu as pltpu

LANE = 128   # intermediate (hidden) dims are zero-padded to multiples of this


def _round_up(n, m):
    return ((n + m - 1) // m) * m


def _leaky_relu(x, negative_slope=0.01):
    return jnp.where(x > 0, x, negative_slope * x)


def _make_mlp_kernel(n_layers):
    """Fused (Linear -> leaky_relu)^(n-1) -> Linear over one batch tile.

    refs = (x_ref, w1_ref, b1_ref, ..., wN_ref, bN_ref, o_ref). Weights are
    [in, out_pad] (pre-transposed + zero-padded in the wrapper), biases are
    [1, out_pad] in f32. Matmuls run in the weights' dtype (f32 or bf16) with
    f32 accumulation; bias add and activation stay in f32.
    """
    def kernel(*refs):
        x_ref, o_ref = refs[0], refs[-1]
        wb = refs[1:-1]
        h = x_ref[...]                                   # already compute dtype
        for i in range(n_layers):
            w = wb[2 * i][...]
            b = wb[2 * i + 1][...]
            acc = jnp.dot(h.astype(w.dtype), w,
                          preferred_element_type=jnp.float32) + b
            if i < n_layers - 1:
                h = _leaky_relu(acc)                     # f32 activation path
            else:
                o_ref[...] = acc.astype(o_ref.dtype)
    return kernel


def prepare_params(params, compute_dtype=jnp.bfloat16):
    """One-time prep (out of the hot path).

    PyTorch [out, in] weights are transposed to [in, out], cast to the matmul
    dtype and zero-padded:
      * layer-0 input dim keeps the real feature width F (no x lane padding),
      * intermediate (hidden) dims are padded to multiples of 128 so the
        intermediate activations / matmuls are lane-dense,
      * the final output dim keeps the real out_size (narrow writeback).
    Zero padding keeps the final result exactly identical.
    Note: on the bf16 path the *activations* are cast to bf16 too (not just the
    weights); accumulation stays f32.
    """
    n = len(params)
    prepared = []
    in_pad = params[0][0].shape[1]            # = input_size F, unpadded
    for i, (w, b) in enumerate(params):
        out_f, in_f = w.shape
        out_pad = out_f if i == n - 1 else _round_up(out_f, LANE)
        wt = jnp.pad(w.T.astype(compute_dtype),
                     ((0, in_pad - in_f), (0, out_pad - out_f)))
        bp = jnp.pad(b.astype(jnp.float32), (0, out_pad - out_f))[None, :]
        prepared.append((wt, bp))
        in_pad = out_pad                      # next layer consumes this width
    return prepared


def _choose_tm(batch, sublane, tm_max):
    """Batch tile: <= tm_max, >= 2 grid steps when the batch permits (so both
    v7x TensorCores get work), dividing the batch tightly so b_pad ~= B."""
    min_steps = 2 if batch > sublane else 1
    steps = max(pl.cdiv(batch, tm_max), min_steps)
    tm = _round_up(pl.cdiv(batch, steps), sublane)
    return min(tm, _round_up(tm_max, sublane))


def net_forward(x, prepared, *, tm_max=1024):
    """Fused MLP over a 1-D batch grid.

    Weights/biases use constant index_maps (block index never changes) so they
    stay resident in VMEM and are single-buffered; x/out batch tiles are
    pipelined (HBM DMA overlapped with the matmuls).
    """
    B, F = x.shape
    compute_dtype = prepared[0][0].dtype
    out_size = prepared[-1][0].shape[1]
    n_layers = len(prepared)

    # bf16 vregs pack (16,128); int8/fp8 pack (32,128).
    sublane = max(8, 32 // jnp.dtype(compute_dtype).itemsize)
    tm = _choose_tm(B, sublane, tm_max)
    b_pad = _round_up(B, tm)

    # Batch-row padding only -- no lane padding of the feature dim.  Casting x
    # to the compute dtype halves the input stream on the bf16 path.
    xp = x.astype(compute_dtype)
    if b_pad != B:
        xp = jnp.pad(xp, ((0, b_pad - B), (0, 0)))

    in_specs = [pl.BlockSpec((tm, F), lambda i: (i, 0))]
    operands = [xp]
    for (w, b) in prepared:
        # Loop-invariant operands: single-buffered, resident in VMEM.
        in_specs.append(pl.BlockSpec(w.shape, lambda i: (0, 0),
                                     pipeline_mode=pl.Buffered(1)))
        in_specs.append(pl.BlockSpec(b.shape, lambda i: (0, 0),
                                     pipeline_mode=pl.Buffered(1)))
        operands += [w, b]

    flops = 2 * b_pad * sum(w.shape[0] * w.shape[1] for w, _ in prepared)
    bytes_accessed = (
        xp.size * xp.dtype.itemsize
        + sum(w.size * w.dtype.itemsize + b.size * b.dtype.itemsize
              for w, b in prepared)
        + b_pad * out_size * 4)

    out_padded = pl.pallas_call(
        _make_mlp_kernel(n_layers),
        out_shape=jax.ShapeDtypeStruct((b_pad, out_size), jnp.float32),
        grid=(b_pad // tm,),
        in_specs=in_specs,
        out_specs=pl.BlockSpec((tm, out_size), lambda i: (i, 0)),
        compiler_params=pltpu.CompilerParams(
            dimension_semantics=("parallel",)),
        cost_estimate=pl.CostEstimate(flops=flops, transcendentals=0,
                                      bytes_accessed=bytes_accessed),
    )(*operands)
    return out_padded[:B] if b_pad != B else out_padded


def init_params(key, input_size, hidden_size, output_size, hidden_layer=1):
    """Synthetic init mirroring the module's layer shapes (PyTorch convention
    W: [out, in]): Linear(in, hidden), hidden_layer x Linear(hidden, hidden),
    Linear(hidden, out)."""
    sizes = [(hidden_size, input_size)]
    for _ in range(hidden_layer):
        sizes.append((hidden_size, hidden_size))
    sizes.append((output_size, hidden_size))

    params = []
    for (out_f, in_f) in sizes:
        key, kw, kb = jax.random.split(key, 3)
        bound = 1.0 / jnp.sqrt(in_f)  # PyTorch Linear default uniform bound
        w = jax.random.uniform(kw, (out_f, in_f), jnp.float32, -bound, bound)
        b = jax.random.uniform(kb, (out_f,), jnp.float32, -bound, bound)
        params.append((w, b))
    return params


def net_forward_ref(x, params):
    """Plain-JAX reference for correctness."""
    n = len(params)
    h = x
    for i, (w, b) in enumerate(params):
        h = h @ w.T + b
        if i != n - 1:
            h = _leaky_relu(h)
    return h


if __name__ == "__main__":
    key = jax.random.PRNGKey(0)
    input_size, hidden_size, output_size = 16, 32, 4
    batch = 8

    kx, kp = jax.random.split(key)
    x = jax.random.normal(kx, (batch, input_size), jnp.float32)
    params = init_params(kp, input_size, hidden_size, output_size, hidden_layer=1)
    ref = net_forward_ref(x, params)

    fwd = jax.jit(net_forward, static_argnames=("tm_max",))

    # Exact f32 matmul path (v5e-safe / accuracy fallback).
    prepared_f32 = prepare_params(params, compute_dtype=jnp.float32)
    out_f32 = jax.block_until_ready(fwd(x, prepared_f32))
    assert out_f32.shape == (batch, output_size)
    assert jnp.allclose(out_f32, ref, atol=1e-5, rtol=1e-5), "f32 mismatch vs reference"

    # Default path: bf16 matmul inputs (weights AND activations), f32
    # accumulation -- v6e/v7x MXU fast path.  Error vs the f32 reference comes
    # from the bf16 activation cast as well as the weights.
    prepared_bf16 = prepare_params(params)
    out_bf16 = jax.block_until_ready(fwd(x, prepared_bf16))
    assert out_bf16.shape == (batch, output_size)
    assert jnp.allclose(out_bf16, ref, atol=5e-2, rtol=5e-2), "bf16 mismatch vs reference"

    print("KERNEL_OK")
</pallas_src>

<mosaic_0001>
module attributes {stable_mosaic.version = 11 : i64} {
  func.func @kernel(%arg0: i32, %arg1: memref<8x16xf32, #tpu.memory_space<vmem>>, %arg2: memref<16x128xf32, #tpu.memory_space<vmem>>, %arg3: memref<1x128xf32, #tpu.memory_space<vmem>>, %arg4: memref<128x128xf32, #tpu.memory_space<vmem>>, %arg5: memref<1x128xf32, #tpu.memory_space<vmem>>, %arg6: memref<128x4xf32, #tpu.memory_space<vmem>>, %arg7: memref<1x4xf32, #tpu.memory_space<vmem>>, %arg8: memref<8x4xf32, #tpu.memory_space<vmem>>) attributes {dimension_semantics = [#tpu.dimension_semantics<parallel>], iteration_bounds = array<i64: 1>, scalar_prefetch = 0 : i64, scratch_operands = 0 : i64, tpu.core_type = #tpu.core_type<tc>, window_params = [{transform_indices = @transform_0, window_bounds = array<i64: 8, 16>}, {pipeline_mode = #tpu.pipeline_mode<synchronous>, transform_indices = @transform_1, window_bounds = array<i64: 16, 128>}, {pipeline_mode = #tpu.pipeline_mode<synchronous>, transform_indices = @transform_2, window_bounds = array<i64: 1, 128>}, {pipeline_mode = #tpu.pipeline_mode<synchronous>, transform_indices = @transform_3, window_bounds = array<i64: 128, 128>}, {pipeline_mode = #tpu.pipeline_mode<synchronous>, transform_indices = @transform_4, window_bounds = array<i64: 1, 128>}, {pipeline_mode = #tpu.pipeline_mode<synchronous>, transform_indices = @transform_5, window_bounds = array<i64: 128, 4>}, {pipeline_mode = #tpu.pipeline_mode<synchronous>, transform_indices = @transform_6, window_bounds = array<i64: 1, 4>}, {transform_indices = @transform_7, window_bounds = array<i64: 8, 4>}]} {
    %c0 = arith.constant 0 : index
    %c0_0 = arith.constant 0 : index
    %0 = vector.load %arg1[%c0, %c0_0] : memref<8x16xf32, #tpu.memory_space<vmem>>, vector<8x16xf32>
    %c0_1 = arith.constant 0 : index
    %c0_2 = arith.constant 0 : index
    %1 = vector.load %arg2[%c0_1, %c0_2] : memref<16x128xf32, #tpu.memory_space<vmem>>, vector<16x128xf32>
    %c0_3 = arith.constant 0 : index
    %c0_4 = arith.constant 0 : index
    %2 = vector.load %arg3[%c0_3, %c0_4] : memref<1x128xf32, #tpu.memory_space<vmem>>, vector<1x128xf32>
    %cst = arith.constant dense<0.000000e+00> : vector<8x128xf32>
    %3 = tpu.matmul %0, %1, %cst {dimension_numbers = #tpu.dot_dimension_numbers<[1], [0], [0], [1], [0, 0, 1, 1], [], []>} : vector<8x16xf32>, vector<16x128xf32>, vector<8x128xf32> -> vector<8x128xf32>
    %4 = vector.broadcast %2 : vector<1x128xf32> to vector<8x128xf32>
    %5 = arith.addf %3, %4 : vector<8x128xf32>
    %cst_5 = arith.constant 0.000000e+00 : f32
    %6 = vector.broadcast %cst_5 : f32 to vector<8x128xf32>
    %7 = arith.cmpf ogt, %5, %6 : vector<8x128xf32>
    %cst_6 = arith.constant 0.00999999977 : f32
    %8 = vector.broadcast %cst_6 : f32 to vector<8x128xf32>
    %9 = arith.mulf %8, %5 : vector<8x128xf32>
    %10 = arith.select %7, %5, %9 : vector<8x128xi1>, vector<8x128xf32>
    %c0_7 = arith.constant 0 : index
    %c0_8 = arith.constant 0 : index
    %11 = vector.load %arg4[%c0_7, %c0_8] : memref<128x128xf32, #tpu.memory_space<vmem>>, vector<128x128xf32>
    %c0_9 = arith.constant 0 : index
    %c0_10 = arith.constant 0 : index
    %12 = vector.load %arg5[%c0_9, %c0_10] : memref<1x128xf32, #tpu.memory_space<vmem>>, vector<1x128xf32>
    %cst_11 = arith.constant dense<0.000000e+00> : vector<8x128xf32>
    %13 = tpu.matmul %10, %11, %cst_11 {dimension_numbers = #tpu.dot_dimension_numbers<[1], [0], [0], [1], [0, 0, 1, 1], [], []>} : vector<8x128xf32>, vector<128x128xf32>, vector<8x128xf32> -> vector<8x128xf32>
    %14 = vector.broadcast %12 : vector<1x128xf32> to vector<8x128xf32>
    %15 = arith.addf %13, %14 : vector<8x128xf32>
    %cst_12 = arith.constant 0.000000e+00 : f32
    %16 = vector.broadcast %cst_12 : f32 to vector<8x128xf32>
    %17 = arith.cmpf ogt, %15, %16 : vector<8x128xf32>
    %cst_13 = arith.constant 0.00999999977 : f32
    %18 = vector.broadcast %cst_13 : f32 to vector<8x128xf32>
    %19 = arith.mulf %18, %15 : vector<8x128xf32>
    %20 = arith.select %17, %15, %19 : vector<8x128xi1>, vector<8x128xf32>
    %c0_14 = arith.constant 0 : index
    %c0_15 = arith.constant 0 : index
    %21 = vector.load %arg6[%c0_14, %c0_15] : memref<128x4xf32, #tpu.memory_space<vmem>>, vector<128x4xf32>
    %c0_16 = arith.constant 0 : index
    %c0_17 = arith.constant 0 : index
    %22 = vector.load %arg7[%c0_16, %c0_17] : memref<1x4xf32, #tpu.memory_space<vmem>>, vector<1x4xf32>
    %cst_18 = arith.constant dense<0.000000e+00> : vector<8x4xf32>
    %23 = tpu.matmul %20, %21, %cst_18 {dimension_numbers = #tpu.dot_dimension_numbers<[1], [0], [0], [1], [0, 0, 1, 1], [], []>} : vector<8x128xf32>, vector<128x4xf32>, vector<8x4xf32> -> vector<8x4xf32>
    %24 = vector.broadcast %22 : vector<1x4xf32> to vector<8x4xf32>
    %25 = arith.addf %23, %24 : vector<8x4xf32>
    %c0_19 = arith.constant 0 : index
    %c0_20 = arith.constant 0 : index
    %26 = vector.load %arg8[%c0_19, %c0_20] : memref<8x4xf32, #tpu.memory_space<vmem>>, vector<8x4xf32>
    tpu.vector_store %arg8[%c0_19, %c0_20], %25 {strides = array<i32>} : memref<8x4xf32, #tpu.memory_space<vmem>>, vector<8x4xf32>,
    return
  }
  func.func @transform_0(%arg0: i32) -> (i32, i32) {
    %c0_i32 = arith.constant 0 : i32
    %c0_i32_0 = arith.constant 0 : i32
    return %arg0, %c0_i32 : i32, i32
  }
  func.func @transform_1(%arg0: i32) -> (i32, i32) {
    %c0_i32 = arith.constant 0 : i32
    %c0_i32_0 = arith.constant 0 : i32
    %c0_i32_1 = arith.constant 0 : i32
    return %c0_i32, %c0_i32_0 : i32, i32
  }
  func.func @transform_2(%arg0: i32) -> (i32, i32) {
    %c0_i32 = arith.constant 0 : i32
    %c0_i32_0 = arith.constant 0 : i32
    %c0_i32_1 = arith.constant 0 : i32
    return %c0_i32, %c0_i32_0 : i32, i32
  }
  func.func @transform_3(%arg0: i32) -> (i32, i32) {
    %c0_i32 = arith.constant 0 : i32
    %c0_i32_0 = arith.constant 0 : i32
    %c0_i32_1 = arith.constant 0 : i32
    return %c0_i32, %c0_i32_0 : i32, i32
  }
  func.func @transform_4(%arg0: i32) -> (i32, i32) {
    %c0_i32 = arith.constant 0 : i32
    %c0_i32_0 = arith.constant 0 : i32
    %c0_i32_1 = arith.constant 0 : i32
    return %c0_i32, %c0_i32_0 : i32, i32
  }
  func.func @transform_5(%arg0: i32) -> (i32, i32) {
    %c0_i32 = arith.constant 0 : i32
    %c0_i32_0 = arith.constant 0 : i32
    %c0_i32_1 = arith.constant 0 : i32
    return %c0_i32, %c0_i32_0 : i32, i32
  }
  func.func @transform_6(%arg0: i32) -> (i32, i32) {
    %c0_i32 = arith.constant 0 : i32
    %c0_i32_0 = arith.constant 0 : i32
    %c0_i32_1 = arith.constant 0 : i32
    return %c0_i32, %c0_i32_0 : i32, i32
  }
  func.func @transform_7(%arg0: i32) -> (i32, i32) {
    %c0_i32 = arith.constant 0 : i32
    %c0_i32_0 = arith.constant 0 : i32
    return %arg0, %c0_i32 : i32, i32
  }
}

</mosaic_0001>

<llo_original>
// kernel: net_forward.1
$region0: #{net_forward.1}
  #allocation0 [shape = 'u32[]', space=smem, size = 0x4, offset = 0x4, fixed_abs, tag = 'smem constant byte address 0x4 - core index']
  #allocation1 [shape = 'u32[144,128]{1,0:T(1,128)}', space=vmem, size = 0x12000, scoped, tag = 'internal scratch']
  %s0 = inlined_call_operand.vmem [shape: f32[8,16], index: 0, kind: input, shape index: {}]
  %s1 = inlined_call_operand.hbm [shape: f32[16,128], index: 1, kind: input, shape index: {}]
  %s2 = inlined_call_operand.vmem [shape: f32[1,128], index: 2, kind: input, shape index: {}]
  %s3 = inlined_call_operand.vmem [shape: f32[128,128], index: 3, kind: input, shape index: {}]
  %s4 = inlined_call_operand.hbm [shape: f32[1,128], index: 4, kind: input, shape index: {}]
  %s5 = inlined_call_operand.vmem [shape: f32[128,4], index: 5, kind: input, shape index: {}]
  %s6 = inlined_call_operand.vmem [shape: f32[1,4], index: 6, kind: input, shape index: {}]
  %s7 = inlined_call_operand.vmem [shape: f32[8,4], index: 7, kind: output, shape index: {}]
  %s8 = sld [smem:[#allocation0]]
  $region46: #{net_forward.1} parent=0
    _
  %s10 = ssub.s32 1, %s8
  %s11 = scalar_select 0, %s10, %s8
  $region1: #{net_forward.1} parent=0
    #allocation2 [shape = 'u8[8192]{0}', space=vmem, size = 0x2000, scoped, tag = 'input window, operand 1, single buffered']
    #allocation3 [shape = 's32[1]{0}', space=sflag, size = 0x4, scoped, tag = 'scoped memory for net_forward.1']
    #allocation4 [shape = 'u8[512]{0}', space=vmem, size = 0x400, scoped, tag = 'input window, operand 4, single buffered']
    #allocation5 [shape = 's32[1]{0}', space=sflag, size = 0x4, scoped, tag = 'scoped memory for net_forward.1']
    %12 = vsyncpa [#allocation3], 0
    %13 = vsyncpa [#allocation5], 0
    // Predicated region
    $region2: #{net_forward.1} parent=1 // pred_check
      _
    $region3: #{net_forward.1} parent=1 // pred_check_branch
      %15 = sbr.rel (0) target = $region5
    $region4: #{net_forward.1} parent=1 // pred_region
      _
    $region5: #{net_forward.1} parent=1 // pred_fallthru
      _
    // Predicated region
    $region6: #{net_forward.1} parent=1 // pred_check
      _
    $region7: #{net_forward.1} parent=1 // pred_check_branch
      %17 = sbr.rel (0) target = $region9
    $region8: #{net_forward.1} parent=1 // pred_region
      %s19 = ssub.s32 256, 256
      %20 = vsyncadd [#allocation3], %s19
      %s21 = sshll.u32 [#allocation2], 4
      %s22 = int_to_ptr.vmem [resolvable:$true] %s21
      %27 = dma.hbm_to_vmem [thread:$0]  %s1, 256, %s22, [#allocation3], 128, 128, 8
    $region9: #{net_forward.1} parent=1 // pred_fallthru
      _
    // Predicated region
    $region10: #{net_forward.1} parent=1 // pred_check
      _
    $region11: #{net_forward.1} parent=1 // pred_check_branch
      %29 = sbr.rel (0) target = $region13
    $region12: #{net_forward.1} parent=1 // pred_region
      _
    $region13: #{net_forward.1} parent=1 // pred_fallthru
      _
    // Predicated region
    $region14: #{net_forward.1} parent=1 // pred_check
      _
    $region15: #{net_forward.1} parent=1 // pred_check_branch
      %31 = sbr.rel (0) target = $region17
    $region16: #{net_forward.1} parent=1 // pred_region
      _
    $region17: #{net_forward.1} parent=1 // pred_fallthru
      _
    // Predicated region
    $region18: #{net_forward.1} parent=1 // pred_check
      _
    $region19: #{net_forward.1} parent=1 // pred_check_branch
      %33 = sbr.rel (0) target = $region21
    $region20: #{net_forward.1} parent=1 // pred_region
      %s35 = ssub.s32 16, 16
      %36 = vsyncadd [#allocation5], %s35
      %s38 = sshll.u32 [#allocation4], 4
      %s39 = int_to_ptr.vmem [resolvable:$true] %s38
      %41 = dma.hbm_to_vmem [thread:$0]  %s4, 16, %s39, [#allocation5]
    $region21: #{net_forward.1} parent=1 // pred_fallthru
      _
    // Predicated region
    $region22: #{net_forward.1} parent=1 // pred_check
      _
    $region23: #{net_forward.1} parent=1 // pred_check_branch
      %43 = sbr.rel (0) target = $region25
    $region24: #{net_forward.1} parent=1 // pred_region
      _
    $region25: #{net_forward.1} parent=1 // pred_fallthru
      _
    // Predicated region
    $region26: #{net_forward.1} parent=1 // pred_check
      _
    $region27: #{net_forward.1} parent=1 // pred_check_branch
      %45 = sbr.rel (0) target = $region29
    $region28: #{net_forward.1} parent=1 // pred_region
      _
    $region29: #{net_forward.1} parent=1 // pred_fallthru
      _
    // Predicated region
    $region30: #{net_forward.1} parent=1 // pred_check
      _
    $region31: #{net_forward.1} parent=1 // pred_check_branch
      %47 = sbr.rel (0) target = $region33
    $region32: #{net_forward.1} parent=1 // pred_region
      %48 = dma.done [#allocation3], 256
    $region33: #{net_forward.1} parent=1 // pred_fallthru
      _
    // Predicated region
    $region34: #{net_forward.1} parent=1 // pred_check
      _
    $region35: #{net_forward.1} parent=1 // pred_check_branch
      %50 = sbr.rel (0) target = $region37
    $region36: #{net_forward.1} parent=1 // pred_region
      %51 = dma.done [#allocation5], 16
    $region37: #{net_forward.1} parent=1 // pred_fallthru
      _
    %v52 = vld [vmem:[%s0] sm:$0xff]
    %v53 = vld [vmem:[#allocation2] sm:$0xff]
    %v54 = vld [vmem:[#allocation2 + $0x8] sm:$0xff]
    %v55 = vld [vmem:[%s2] sm:$0x1]
    %v57 = vlaneseq
    %v58 = vshrl.u32 %v57, 7
    %v59 = vsub.s32 0, %v58
    %v60 = vrot.slane %v55, %v59
    %vm62 = vcmask 130048
    %v64 = vsel %vm62, %v52, 0
    %66 = vmatprep.subr.mxu0 0.0
    %67 = vmatpush1.msra.mxu0 0.0
    %68 = vmatprep.subr.mxu0 0.0
    %69 = vmatpush1.msra.mxu0 0.0
    %70 = vmatprep.subr.mxu0 0.0
    %71 = vmatpush1.msra.mxu0 0.0
    %72 = vmatprep.subr.mxu0 0.0
    %73 = vmatpush1.msra.mxu0 0.0
    %74 = vmatprep.subr.mxu0 0.0
    %75 = vmatpush1.msra.mxu0 0.0
    %76 = vmatprep.subr.mxu0 0.0
    %77 = vmatpush1.msra.mxu0 0.0
    %78 = vmatprep.subr.mxu0 0.0
    %79 = vmatpush1.msra.mxu0 0.0
    %80 = vmatprep.subr.mxu0 0.0
    %81 = vmatpush1.msra.mxu0 0.0
    %82 = vmatprep.subr.mxu0 0.0
    %83 = vmatpush1.msra.mxu0 0.0
    %84 = vmatprep.subr.mxu0 0.0
    %85 = vmatpush1.msra.mxu0 0.0
    %86 = vmatprep.subr.mxu0 0.0
    %87 = vmatpush1.msra.mxu0 0.0
    %88 = vmatprep.subr.mxu0 0.0
    %89 = vmatpush1.msra.mxu0 0.0
    %90 = vmatprep.subr.mxu0 0.0
    %91 = vmatpush1.msra.mxu0 0.0
    %92 = vmatprep.subr.mxu0 0.0
    %93 = vmatpush1.msra.mxu0 0.0
    %94 = vmatprep.subr.mxu0 0.0
    %95 = vmatpush1.msra.mxu0 %v54
    %96 = vmatprep.subr.mxu0 0.0
    %97 = vmatpush1.msra.mxu0 %v53
    %98 = vmatprep.subr.mxu0 0.0
    %99 = vmatpush2.msra.mxu0 0.0
    %100 = vmatprep.subr.mxu0 0.0
    %101 = vmatpush2.msra.mxu0 0.0
    %102 = vmatprep.subr.mxu0 0.0
    %103 = vmatpush2.msra.mxu0 0.0
    %104 = vmatprep.subr.mxu0 0.0
    %105 = vmatpush2.msra.mxu0 0.0
    %106 = vmatprep.subr.mxu0 0.0
    %107 = vmatpush2.msra.mxu0 0.0
    %108 = vmatprep.subr.mxu0 0.0
    %109 = vmatpush2.msra.mxu0 0.0
    %110 = vmatprep.subr.mxu0 0.0
    %111 = vmatpush2.msra.mxu0 0.0
    %112 = vmatprep.subr.mxu0 0.0
    %113 = vmatpush2.msra.mxu0 0.0
    %114 = vmatprep.subr.mxu0 0.0
    %115 = vmatpush2.msra.mxu0 0.0
    %116 = vmatprep.subr.mxu0 0.0
    %117 = vmatpush2.msra.mxu0 0.0
    %118 = vmatprep.subr.mxu0 0.0
    %119 = vmatpush2.msra.mxu0 0.0
    %120 = vmatprep.subr.mxu0 0.0
    %121 = vmatpush2.msra.mxu0 0.0
    %122 = vmatprep.subr.mxu0 0.0
    %123 = vmatpush2.msra.mxu0 0.0
    %124 = vmatprep.subr.mxu0 0.0
    %125 = vmatpush2.msra.mxu0 0.0
    %126 = vmatprep.subr.mxu0 0.0
    %127 = vmatpush2.msra.mxu0 0.0
    %128 = vmatprep.subr.mxu0 0.0
    %129 = vmatpush2.msra.mxu0 0.0
    %130 = vmatprep.mubr.f32.mxu0 0.0
    %131 = vmatmul.mubr.f32.gmra.mxu0 %v64
    %v132 = vpop.f32.mrf.mxu0
    %v133 = vadd.f32 %v60, %v132
    %v134 = vpop.f32.mrf.mxu0
    %135 = vdwg.mxu0
    %vm136 = vcmp.gt.f32.partialorder %v133, 0.0
    %v137 = vmul.f32 %v133, 0.01
    %v138 = vsel %vm136, %v133, %v137
    %v139 = vld [vmem:[%s3] sm:$0xff]
    %v140 = vld [vmem:[%s3 + $0x8] sm:$0xff]
    %v141 = vld [vmem:[%s3 + $0x10] sm:$0xff]
    %v142 = vld [vmem:[%s3 + $0x18] sm:$0xff]
    %v143 = vld [vmem:[%s3 + $0x20] sm:$0xff]
    %v144 = vld [vmem:[%s3 + $0x28] sm:$0xff]
    %v145 = vld [vmem:[%s3 + $0x30] sm:$0xff]
    %v146 = vld [vmem:[%s3 + $0x38] sm:$0xff]
    %v147 = vld [vmem:[%s3 + $0x40] sm:$0xff]
    %v148 = vld [vmem:[%s3 + $0x48] sm:$0xff]
    %v149 = vld [vmem:[%s3 + $0x50] sm:$0xff]
    %v150 = vld [vmem:[%s3 + $0x58] sm:$0xff]
    %v151 = vld [vmem:[%s3 + $0x60] sm:$0xff]
    %v152 = vld [vmem:[%s3 + $0x68] sm:$0xff]
    %v153 = vld [vmem:[%s3 + $0x70] sm:$0xff]
    %v154 = vld [vmem:[%s3 + $0x78] sm:$0xff]
    %v155 = vld [vmem:[#allocation4] sm:$0x1]
    %v157 = vlaneseq
    %v158 = vshrl.u32 %v157, 7
    %v159 = vsub.s32 0, %v158
    %v160 = vrot.slane %v155, %v159
    %162 = vmatprep.subr.mxu0 0.0
    %163 = vmatpush1.msra.mxu0 %v154
    %164 = vmatprep.subr.mxu0 0.0
    %165 = vmatpush1.msra.mxu0 %v153
    %166 = vmatprep.subr.mxu0 0.0
    %167 = vmatpush1.msra.mxu0 %v152
    %168 = vmatprep.subr.mxu0 0.0
    %169 = vmatpush1.msra.mxu0 %v151
    %170 = vmatprep.subr.mxu0 0.0
    %171 = vmatpush1.msra.mxu0 %v150
    %172 = vmatprep.subr.mxu0 0.0
    %173 = vmatpush1.msra.mxu0 %v149
    %174 = vmatprep.subr.mxu0 0.0
    %175 = vmatpush1.msra.mxu0 %v148
    %176 = vmatprep.subr.mxu0 0.0
    %177 = vmatpush1.msra.mxu0 %v147
    %178 = vmatprep.subr.mxu0 0.0
    %179 = vmatpush1.msra.mxu0 %v146
    %180 = vmatprep.subr.mxu0 0.0
    %181 = vmatpush1.msra.mxu0 %v145
    %182 = vmatprep.subr.mxu0 0.0
    %183 = vmatpush1.msra.mxu0 %v144
    %184 = vmatprep.subr.mxu0 0.0
    %185 = vmatpush1.msra.mxu0 %v143
    %186 = vmatprep.subr.mxu0 0.0
    %187 = vmatpush1.msra.mxu0 %v142
    %188 = vmatprep.subr.mxu0 0.0
    %189 = vmatpush1.msra.mxu0 %v141
    %190 = vmatprep.subr.mxu0 0.0
    %191 = vmatpush1.msra.mxu0 %v140
    %192 = vmatprep.subr.mxu0 0.0
    %193 = vmatpush1.msra.mxu0 %v139
    %194 = vmatprep.subr.mxu0 0.0
    %195 = vmatpush2.msra.mxu0 0.0
    %196 = vmatprep.subr.mxu0 0.0
    %197 = vmatpush2.msra.mxu0 0.0
    %198 = vmatprep.subr.mxu0 0.0
    %199 = vmatpush2.msra.mxu0 0.0
    %200 = vmatprep.subr.mxu0 0.0
    %201 = vmatpush2.msra.mxu0 0.0
    %202 = vmatprep.subr.mxu0 0.0
    %203 = vmatpush2.msra.mxu0 0.0
    %204 = vmatprep.subr.mxu0 0.0
    %205 = vmatpush2.msra.mxu0 0.0
    %206 = vmatprep.subr.mxu0 0.0
    %207 = vmatpush2.msra.mxu0 0.0
    %208 = vmatprep.subr.mxu0 0.0
    %209 = vmatpush2.msra.mxu0 0.0
    %210 = vmatprep.subr.mxu0 0.0
    %211 = vmatpush2.msra.mxu0 0.0
    %212 = vmatprep.subr.mxu0 0.0
    %213 = vmatpush2.msra.mxu0 0.0
    %214 = vmatprep.subr.mxu0 0.0
    %215 = vmatpush2.msra.mxu0 0.0
    %216 = vmatprep.subr.mxu0 0.0
    %217 = vmatpush2.msra.mxu0 0.0
    %218 = vmatprep.subr.mxu0 0.0
    %219 = vmatpush2.msra.mxu0 0.0
    %220 = vmatprep.subr.mxu0 0.0
    %221 = vmatpush2.msra.mxu0 0.0
    %222 = vmatprep.subr.mxu0 0.0
    %223 = vmatpush2.msra.mxu0 0.0
    %224 = vmatprep.subr.mxu0 0.0
    %225 = vmatpush2.msra.mxu0 0.0
    %226 = vmatprep.mubr.f32.mxu0 0.0
    %227 = vmatmul.mubr.f32.gmra.mxu0 %v138
    %v228 = vpop.f32.mrf.mxu0
    %v229 = vadd.f32 %v160, %v228
    %v230 = vpop.f32.mrf.mxu0
    %231 = vdwg.mxu0
    %vm232 = vcmp.gt.f32.partialorder %v229, 0.0
    %v233 = vmul.f32 %v229, 0.01
    %v234 = vsel %vm232, %v229, %v233
    %v235 = vld [vmem:[%s5] sm:$0xff]
    %v236 = vld [vmem:[%s5 + $0x8] sm:$0xff]
    %v237 = vld [vmem:[%s5 + $0x10] sm:$0xff]
    %v238 = vld [vmem:[%s5 + $0x18] sm:$0xff]
    %v239 = vld [vmem:[%s5 + $0x20] sm:$0xff]
    %v240 = vld [vmem:[%s5 + $0x28] sm:$0xff]
    %v241 = vld [vmem:[%s5 + $0x30] sm:$0xff]
    %v242 = vld [vmem:[%s5 + $0x38] sm:$0xff]
    %v243 = vld [vmem:[%s5 + $0x40] sm:$0xff]
    %v244 = vld [vmem:[%s5 + $0x48] sm:$0xff]
    %v245 = vld [vmem:[%s5 + $0x50] sm:$0xff]
    %v246 = vld [vmem:[%s5 + $0x58] sm:$0xff]
    %v247 = vld [vmem:[%s5 + $0x60] sm:$0xff]
    %v248 = vld [vmem:[%s5 + $0x68] sm:$0xff]
    %v249 = vld [vmem:[%s5 + $0x70] sm:$0xff]
    %v250 = vld [vmem:[%s5 + $0x78] sm:$0xff]
    %v251 = vld [vmem:[%s6] sm:$0x1]
    %v253 = vlaneseq
    %v254 = vshrl.u32 %v253, 7
    %v255 = vsub.s32 0, %v254
    %v256 = vrot.slane %v251, %v255
    %258 = vmatprep.subr.mxu0 0.0
    %259 = vmatpush1.msra.mxu0 %v250
    %260 = vmatprep.subr.mxu0 0.0
    %261 = vmatpush1.msra.mxu0 %v249
    %262 = vmatprep.subr.mxu0 0.0
    %263 = vmatpush1.msra.mxu0 %v248
    %264 = vmatprep.subr.mxu0 0.0
    %265 = vmatpush1.msra.mxu0 %v247
    %266 = vmatprep.subr.mxu0 0.0
    %267 = vmatpush1.msra.mxu0 %v246
    %268 = vmatprep.subr.mxu0 0.0
    %269 = vmatpush1.msra.mxu0 %v245
    %270 = vmatprep.subr.mxu0 0.0
    %271 = vmatpush1.msra.mxu0 %v244
    %272 = vmatprep.subr.mxu0 0.0
    %273 = vmatpush1.msra.mxu0 %v243
    %274 = vmatprep.subr.mxu0 0.0
    %275 = vmatpush1.msra.mxu0 %v242
    %276 = vmatprep.subr.mxu0 0.0
    %277 = vmatpush1.msra.mxu0 %v241
    %278 = vmatprep.subr.mxu0 0.0
    %279 = vmatpush1.msra.mxu0 %v240
    %280 = vmatprep.subr.mxu0 0.0
    %281 = vmatpush1.msra.mxu0 %v239
    %282 = vmatprep.subr.mxu0 0.0
    %283 = vmatpush1.msra.mxu0 %v238
    %284 = vmatprep.subr.mxu0 0.0
    %285 = vmatpush1.msra.mxu0 %v237
    %286 = vmatprep.subr.mxu0 0.0
    %287 = vmatpush1.msra.mxu0 %v236
    %288 = vmatprep.subr.mxu0 0.0
    %289 = vmatpush1.msra.mxu0 %v235
    %290 = vmatprep.subr.mxu0 0.0
    %291 = vmatpush2.msra.mxu0 0.0
    %292 = vmatprep.subr.mxu0 0.0
    %293 = vmatpush2.msra.mxu0 0.0
    %294 = vmatprep.subr.mxu0 0.0
    %295 = vmatpush2.msra.mxu0 0.0
    %296 = vmatprep.subr.mxu0 0.0
    %297 = vmatpush2.msra.mxu0 0.0
    %298 = vmatprep.subr.mxu0 0.0
    %299 = vmatpush2.msra.mxu0 0.0
    %300 = vmatprep.subr.mxu0 0.0
    %301 = vmatpush2.msra.mxu0 0.0
    %302 = vmatprep.subr.mxu0 0.0
    %303 = vmatpush2.msra.mxu0 0.0
    %304 = vmatprep.subr.mxu0 0.0
    %305 = vmatpush2.msra.mxu0 0.0
    %306 = vmatprep.subr.mxu0 0.0
    %307 = vmatpush2.msra.mxu0 0.0
    %308 = vmatprep.subr.mxu0 0.0
    %309 = vmatpush2.msra.mxu0 0.0
    %310 = vmatprep.subr.mxu0 0.0
    %311 = vmatpush2.msra.mxu0 0.0
    %312 = vmatprep.subr.mxu0 0.0
    %313 = vmatpush2.msra.mxu0 0.0
    %314 = vmatprep.subr.mxu0 0.0
    %315 = vmatpush2.msra.mxu0 0.0
    %316 = vmatprep.subr.mxu0 0.0
    %317 = vmatpush2.msra.mxu0 0.0
    %318 = vmatprep.subr.mxu0 0.0
    %319 = vmatpush2.msra.mxu0 0.0
    %320 = vmatprep.subr.mxu0 0.0
    %321 = vmatpush2.msra.mxu0 0.0
    %322 = vmatprep.mubr.f32.mxu0 0.0
    %323 = vmatmul.mubr.f32.gmra.mxu0 %v234
    %v324 = vpop.f32.mrf.mxu0
    %v325 = vadd.f32 %v256, %v324
    %v326 = vpop.f32.mrf.mxu0
    %327 = vdwg.mxu0
    %vm328 = vcmask 31744
    %329 = vst.msk [vmem:[%s7] sm:$0xff] %vm328, %v325
    // Predicated region
    $region38: #{net_forward.1} parent=1 // pred_check
      _
    $region39: #{net_forward.1} parent=1 // pred_check_branch
      %331 = sbr.rel (0) target = $region41
    $region40: #{net_forward.1} parent=1 // pred_region
      _
    $region41: #{net_forward.1} parent=1 // pred_fallthru
      _
    // Predicated region
    $region42: #{net_forward.1} parent=1 // pred_check
      _
    $region43: #{net_forward.1} parent=1 // pred_check_branch
      %333 = sbr.rel (0) target = $region45
    $region44: #{net_forward.1} parent=1 // pred_region
      _
    $region45: #{net_forward.1} parent=1 // pred_fallthru
      _
    %334 = vsyncpa [#allocation3], 1
    %335 = vsyncpa [#allocation5], 1

</llo_original>
